<compile_context>
chip_gen: v7x
topology: tpu7x:2x2x1
jax: 0.10.0
libtpu: 0.0.40
codegen_flags: <defaults>
</compile_context>

<pallas_src>
import jax
import jax.numpy as jnp
import numpy as np
from jax.experimental import pallas as pl
from jax.experimental.pallas import tpu as pltpu

LOG_MAX = 2.0
LOG_MIN = -20.0


def _round_up(x, m):
    return ((x + m - 1) // m) * m


def _soft_actor_kernel(x_ref, w1_ref, b1_ref, w2_ref, b2_ref, w3_ref, b3_ref,
                       out_ref):
    """Feature-major MLP: x is (obs_dim, tb), weights are (out, in)."""
    wdt = w1_ref.dtype
    # hidden layer 1: Linear + Tanh  -> (h1, tb)
    h1 = jnp.tanh(
        jnp.dot(w1_ref[...], x_ref[...], preferred_element_type=jnp.float32)
        + b1_ref[...])
    # hidden layer 2: Linear + Tanh  -> (h2, tb)
    h2 = jnp.tanh(
        jnp.dot(w2_ref[...], h1.astype(wdt), preferred_element_type=jnp.float32)
        + b2_ref[...])
    # output layer: Linear + Identity -> (2*action_dim, tb) = [mu ; log_std]
    out_ref[...] = (
        jnp.dot(w3_ref[...], h2.astype(wdt), preferred_element_type=jnp.float32)
        + b3_ref[...])


def soft_actor_forward(state, params, *, action_dim, action_loc=0.0,
                       action_scale=1.0, batch_tile=4096,
                       compute_dtype=jnp.bfloat16):
    """Runs the SoftActor MLP as a batch-tiled, batch-on-lanes Pallas kernel.

    Returns (mu, log_std, mean_action):
      * (mu, log_std) parameterize the Tanh/Affine-transformed Normal policy.
      * mean_action == loc * tanh(mu) + scale  (the `mean_action=True` branch,
        reproduced verbatim from the PyTorch code).
    """
    w1, b1, w2, b2, w3, b3 = params
    batch, obs_dim = state.shape
    out_width = 2 * action_dim

    # ---- tile selection: lane-dense (multiple of 128) batch tiles ----------
    tb = min(_round_up(batch_tile, 128), _round_up(batch, 128))
    # keep >= 2 grid steps when the batch allows it so both v7x TensorCores
    # get work from the "parallel" batch axis
    if batch > 128 and pl.cdiv(batch, tb) < 2:
        tb = _round_up(pl.cdiv(batch, 2), 128)
    grid_steps = pl.cdiv(batch, tb)
    padded = grid_steps * tb

    # ---- one-time layout plumbing (fused by XLA): feature-major, low-prec --
    state_t = state.astype(compute_dtype).T              # (obs_dim, batch)
    if padded != batch:
        state_t = jnp.pad(state_t, ((0, 0), (0, padded - batch)))
    w1t = w1.T.astype(compute_dtype)                      # (h1, obs)
    w2t = w2.T.astype(compute_dtype)                      # (h2, h1)
    w3t = w3.T.astype(compute_dtype)                      # (2A, h2)
    b1t = b1.reshape(-1, 1).astype(jnp.float32)           # (h1, 1)
    b2t = b2.reshape(-1, 1).astype(jnp.float32)           # (h2, 1)
    b3t = b3.reshape(-1, 1).astype(jnp.float32)           # (2A, 1)

    const = lambda i: (0, 0)   # weights/biases resident, DMA'd once
    slab = pl.pallas_call(
        _soft_actor_kernel,
        out_shape=jax.ShapeDtypeStruct((out_width, padded), jnp.float32),
        grid_spec=pltpu.PrefetchScalarGridSpec(
            num_scalar_prefetch=0,
            grid=(grid_steps,),
            in_specs=[
                pl.BlockSpec((obs_dim, tb), lambda i: (0, i)),
                pl.BlockSpec(w1t.shape, const),
                pl.BlockSpec(b1t.shape, const),
                pl.BlockSpec(w2t.shape, const),
                pl.BlockSpec(b2t.shape, const),
                pl.BlockSpec(w3t.shape, const),
                pl.BlockSpec(b3t.shape, const),
            ],
            out_specs=pl.BlockSpec((out_width, tb), lambda i: (0, i)),
        ),
        compiler_params=pltpu.CompilerParams(
            dimension_semantics=("parallel",)),
    )(state_t, w1t, b1t, w2t, b2t, w3t, b3t)

    # ---- epilogue: fused XLA elementwise on the tiny (2A, batch) slab ------
    slab = slab[:, :batch]
    mu = slab[:action_dim, :].T                           # (batch, action_dim)
    log_std = jnp.clip(slab[action_dim:, :], LOG_MIN, LOG_MAX).T
    # mean_action branch, verbatim: self.loc * tanh(mu) + self.scale
    mean_action = float(action_loc) * jnp.tanh(mu) + float(action_scale)
    return mu, log_std, mean_action


def init_soft_actor_params(key, observation_dim, action_dim,
                           hidden_layer_size=(32, 32)):
    """Deterministic init mimicking nn.Linear's U(-1/sqrt(fan_in), 1/sqrt(fan_in)).

    Weights stored as (in_features, out_features) (transpose of nn.Linear),
    biases as (1, out_features).
    """
    sizes = [observation_dim] + list(hidden_layer_size) + [2 * action_dim]
    params = []
    for i in range(len(sizes) - 1):
        fan_in, fan_out = sizes[i], sizes[i + 1]
        key, wk, bk = jax.random.split(key, 3)
        bound = 1.0 / np.sqrt(fan_in)
        w = jax.random.uniform(wk, (fan_in, fan_out), jnp.float32, -bound, bound)
        b = jax.random.uniform(bk, (1, fan_out), jnp.float32, -bound, bound)
        params += [w, b]
    return tuple(params)


def _reference_forward(state, params, action_dim, loc, scale):
    w1, b1, w2, b2, w3, b3 = params
    h1 = jnp.tanh(state @ w1 + b1)
    h2 = jnp.tanh(h1 @ w2 + b2)
    out = h2 @ w3 + b3
    mu, log_std = out[:, :action_dim], out[:, action_dim:]
    log_std = jnp.clip(log_std, LOG_MIN, LOG_MAX)
    mean_action = loc * jnp.tanh(mu) + scale
    return mu, log_std, mean_action


if __name__ == "__main__":
    key = jax.random.PRNGKey(0)

    batch = 12                     # non-multiple of the lane tile -> exercises padding
    observation_dim = 16
    action_dim = 4
    hidden_layer_size = (32, 32)
    action_loc = 0.0
    action_scale = 1.0

    key, pkey, skey = jax.random.split(key, 3)
    params = init_soft_actor_params(pkey, observation_dim, action_dim,
                                    hidden_layer_size)
    state = jax.random.normal(skey, (batch, observation_dim), jnp.float32)

    mu_r, log_std_r, mean_r = _reference_forward(
        state, params, action_dim, action_loc, action_scale)

    # 1) f32 compute path: structural-correctness check (same math as ref)
    mu32, log_std32, mean32 = soft_actor_forward(
        state, params, action_dim=action_dim,
        action_loc=action_loc, action_scale=action_scale,
        compute_dtype=jnp.float32)
    jax.block_until_ready((mu32, log_std32, mean32))
    np.testing.assert_allclose(np.asarray(mu32), np.asarray(mu_r),
                               rtol=1e-3, atol=1e-3)
    np.testing.assert_allclose(np.asarray(log_std32), np.asarray(log_std_r),
                               rtol=1e-3, atol=1e-3)
    np.testing.assert_allclose(np.asarray(mean32), np.asarray(mean_r),
                               rtol=1e-3, atol=1e-3)

    # 2) default bf16-operand path (performance layout): loose sanity check
    #    against the f32 reference (bf16 operands -> ~1e-2 level differences)
    mu, log_std, mean_action = soft_actor_forward(
        state, params, action_dim=action_dim,
        action_loc=action_loc, action_scale=action_scale)
    jax.block_until_ready((mu, log_std, mean_action))
    np.testing.assert_allclose(np.asarray(mu), np.asarray(mu_r),
                               rtol=1e-1, atol=1e-1)
    np.testing.assert_allclose(np.asarray(log_std), np.asarray(log_std_r),
                               rtol=1e-1, atol=1e-1)
    np.testing.assert_allclose(np.asarray(mean_action), np.asarray(mean_r),
                               rtol=1e-1, atol=1e-1)

    print("KERNEL_OK")
</pallas_src>

<mosaic_0001>
module attributes {stable_mosaic.version = 11 : i64} {
  func.func @_soft_actor_kernel(%arg0: i32, %arg1: memref<16x128xf32, #tpu.memory_space<vmem>>, %arg2: memref<32x16xf32, #tpu.memory_space<vmem>>, %arg3: memref<32x1xf32, #tpu.memory_space<vmem>>, %arg4: memref<32x32xf32, #tpu.memory_space<vmem>>, %arg5: memref<32x1xf32, #tpu.memory_space<vmem>>, %arg6: memref<8x32xf32, #tpu.memory_space<vmem>>, %arg7: memref<8x1xf32, #tpu.memory_space<vmem>>, %arg8: memref<8x128xf32, #tpu.memory_space<vmem>>) attributes {dimension_semantics = [#tpu.dimension_semantics<parallel>], iteration_bounds = array<i64: 1>, scalar_prefetch = 0 : i64, scratch_operands = 0 : i64, tpu.core_type = #tpu.core_type<tc>, window_params = [{transform_indices = @transform_0, window_bounds = array<i64: 16, 128>}, {pipeline_mode = #tpu.pipeline_mode<synchronous>, transform_indices = @transform_1, window_bounds = array<i64: 32, 16>}, {pipeline_mode = #tpu.pipeline_mode<synchronous>, transform_indices = @transform_2, window_bounds = array<i64: 32, 1>}, {pipeline_mode = #tpu.pipeline_mode<synchronous>, transform_indices = @transform_3, window_bounds = array<i64: 32, 32>}, {pipeline_mode = #tpu.pipeline_mode<synchronous>, transform_indices = @transform_4, window_bounds = array<i64: 32, 1>}, {pipeline_mode = #tpu.pipeline_mode<synchronous>, transform_indices = @transform_5, window_bounds = array<i64: 8, 32>}, {pipeline_mode = #tpu.pipeline_mode<synchronous>, transform_indices = @transform_6, window_bounds = array<i64: 8, 1>}, {transform_indices = @transform_7, window_bounds = array<i64: 8, 128>}]} {
    %c0 = arith.constant 0 : index
    %c0_0 = arith.constant 0 : index
    %0 = vector.load %arg2[%c0, %c0_0] : memref<32x16xf32, #tpu.memory_space<vmem>>, vector<32x16xf32>
    %c0_1 = arith.constant 0 : index
    %c0_2 = arith.constant 0 : index
    %1 = vector.load %arg1[%c0_1, %c0_2] : memref<16x128xf32, #tpu.memory_space<vmem>>, vector<16x128xf32>
    %cst = arith.constant dense<0.000000e+00> : vector<32x128xf32>
    %2 = tpu.matmul %0, %1, %cst {dimension_numbers = #tpu.dot_dimension_numbers<[1], [0], [0], [1], [0, 0, 1, 1], [], []>} : vector<32x16xf32>, vector<16x128xf32>, vector<32x128xf32> -> vector<32x128xf32>
    %c0_3 = arith.constant 0 : index
    %c0_4 = arith.constant 0 : index
    %3 = vector.load %arg3[%c0_3, %c0_4] : memref<32x1xf32, #tpu.memory_space<vmem>>, vector<32x1xf32>
    %4 = vector.broadcast %3 : vector<32x1xf32> to vector<32x128xf32>
    %5 = arith.addf %2, %4 : vector<32x128xf32>
    %6 = math.tanh %5 : vector<32x128xf32>
    %c0_5 = arith.constant 0 : index
    %c0_6 = arith.constant 0 : index
    %7 = vector.load %arg4[%c0_5, %c0_6] : memref<32x32xf32, #tpu.memory_space<vmem>>, vector<32x32xf32>
    %cst_7 = arith.constant dense<0.000000e+00> : vector<32x128xf32>
    %8 = tpu.matmul %7, %6, %cst_7 {dimension_numbers = #tpu.dot_dimension_numbers<[1], [0], [0], [1], [0, 0, 1, 1], [], []>} : vector<32x32xf32>, vector<32x128xf32>, vector<32x128xf32> -> vector<32x128xf32>
    %c0_8 = arith.constant 0 : index
    %c0_9 = arith.constant 0 : index
    %9 = vector.load %arg5[%c0_8, %c0_9] : memref<32x1xf32, #tpu.memory_space<vmem>>, vector<32x1xf32>
    %10 = vector.broadcast %9 : vector<32x1xf32> to vector<32x128xf32>
    %11 = arith.addf %8, %10 : vector<32x128xf32>
    %12 = math.tanh %11 : vector<32x128xf32>
    %c0_10 = arith.constant 0 : index
    %c0_11 = arith.constant 0 : index
    %13 = vector.load %arg6[%c0_10, %c0_11] : memref<8x32xf32, #tpu.memory_space<vmem>>, vector<8x32xf32>
    %cst_12 = arith.constant dense<0.000000e+00> : vector<8x128xf32>
    %14 = tpu.matmul %13, %12, %cst_12 {dimension_numbers = #tpu.dot_dimension_numbers<[1], [0], [0], [1], [0, 0, 1, 1], [], []>} : vector<8x32xf32>, vector<32x128xf32>, vector<8x128xf32> -> vector<8x128xf32>
    %c0_13 = arith.constant 0 : index
    %c0_14 = arith.constant 0 : index
    %15 = vector.load %arg7[%c0_13, %c0_14] : memref<8x1xf32, #tpu.memory_space<vmem>>, vector<8x1xf32>
    %16 = vector.broadcast %15 : vector<8x1xf32> to vector<8x128xf32>
    %17 = arith.addf %14, %16 : vector<8x128xf32>
    %c0_15 = arith.constant 0 : index
    %c0_16 = arith.constant 0 : index
    %18 = vector.load %arg8[%c0_15, %c0_16] : memref<8x128xf32, #tpu.memory_space<vmem>>, vector<8x128xf32>
    tpu.vector_store %arg8[%c0_15, %c0_16], %17 {strides = array<i32>} : memref<8x128xf32, #tpu.memory_space<vmem>>, vector<8x128xf32>,
    return
  }
  func.func @transform_0(%arg0: i32) -> (i32, i32) {
    %c0_i32 = arith.constant 0 : i32
    %c0_i32_0 = arith.constant 0 : i32
    return %c0_i32, %arg0 : i32, i32
  }
  func.func @transform_1(%arg0: i32) -> (i32, i32) {
    %c0_i32 = arith.constant 0 : i32
    %c0_i32_0 = arith.constant 0 : i32
    %c0_i32_1 = arith.constant 0 : i32
    return %c0_i32, %c0_i32_0 : i32, i32
  }
  func.func @transform_2(%arg0: i32) -> (i32, i32) {
    %c0_i32 = arith.constant 0 : i32
    %c0_i32_0 = arith.constant 0 : i32
    %c0_i32_1 = arith.constant 0 : i32
    return %c0_i32, %c0_i32_0 : i32, i32
  }
  func.func @transform_3(%arg0: i32) -> (i32, i32) {
    %c0_i32 = arith.constant 0 : i32
    %c0_i32_0 = arith.constant 0 : i32
    %c0_i32_1 = arith.constant 0 : i32
    return %c0_i32, %c0_i32_0 : i32, i32
  }
  func.func @transform_4(%arg0: i32) -> (i32, i32) {
    %c0_i32 = arith.constant 0 : i32
    %c0_i32_0 = arith.constant 0 : i32
    %c0_i32_1 = arith.constant 0 : i32
    return %c0_i32, %c0_i32_0 : i32, i32
  }
  func.func @transform_5(%arg0: i32) -> (i32, i32) {
    %c0_i32 = arith.constant 0 : i32
    %c0_i32_0 = arith.constant 0 : i32
    %c0_i32_1 = arith.constant 0 : i32
    return %c0_i32, %c0_i32_0 : i32, i32
  }
  func.func @transform_6(%arg0: i32) -> (i32, i32) {
    %c0_i32 = arith.constant 0 : i32
    %c0_i32_0 = arith.constant 0 : i32
    %c0_i32_1 = arith.constant 0 : i32
    return %c0_i32, %c0_i32_0 : i32, i32
  }
  func.func @transform_7(%arg0: i32) -> (i32, i32) {
    %c0_i32 = arith.constant 0 : i32
    %c0_i32_0 = arith.constant 0 : i32
    return %c0_i32, %arg0 : i32, i32
  }
}

</mosaic_0001>

<llo_original>
// kernel: tpu_custom_call.1
$region0: #{tpu_custom_call.1}
  #allocation0 [shape = 'u32[]', space=smem, size = 0x4, offset = 0x4, fixed_abs, tag = 'smem constant byte address 0x4 - core index']
  #allocation1 [shape = 'u32[144,128]{1,0:T(1,128)}', space=vmem, size = 0x12000, scoped, tag = 'internal scratch']
  %s0 = inlined_call_operand.vmem [shape: f32[16,128], index: 0, kind: input, shape index: {}]
  %s1 = inlined_call_operand.vmem [shape: f32[32,16], index: 1, kind: input, shape index: {}]
  %s2 = inlined_call_operand.vmem [shape: f32[32,1], index: 2, kind: input, shape index: {}]
  %s3 = inlined_call_operand.vmem [shape: f32[32,32], index: 3, kind: input, shape index: {}]
  %s4 = inlined_call_operand.vmem [shape: f32[32,1], index: 4, kind: input, shape index: {}]
  %s5 = inlined_call_operand.vmem [shape: f32[8,32], index: 5, kind: input, shape index: {}]
  %s6 = inlined_call_operand.vmem [shape: f32[8,1], index: 6, kind: input, shape index: {}]
  %s7 = inlined_call_operand.hbm [shape: f32[8,128], index: 7, kind: output, shape index: {}]
  %s8 = sld [smem:[#allocation0]]
  $region38: #{tpu_custom_call.1} parent=0
    _
  %s10 = ssub.s32 1, %s8
  %s11 = scalar_select 0, %s10, %s8
  $region1: #{tpu_custom_call.1} parent=0
    #allocation2 [shape = 'u8[4096]{0}', space=vmem, size = 0x1000, scoped, tag = 'output window, operand 0, single buffered']
    #allocation3 [shape = 's32[1]{0}', space=sflag, size = 0x4, scoped, tag = 'scoped memory for tpu_custom_call.1']
    %12 = vsyncpa [#allocation3], 0
    // Predicated region
    $region2: #{tpu_custom_call.1} parent=1 // pred_check
      _
    $region3: #{tpu_custom_call.1} parent=1 // pred_check_branch
      %14 = sbr.rel (0) target = $region5
    $region4: #{tpu_custom_call.1} parent=1 // pred_region
      _
    $region5: #{tpu_custom_call.1} parent=1 // pred_fallthru
      _
    // Predicated region
    $region6: #{tpu_custom_call.1} parent=1 // pred_check
      _
    $region7: #{tpu_custom_call.1} parent=1 // pred_check_branch
      %16 = sbr.rel (0) target = $region9
    $region8: #{tpu_custom_call.1} parent=1 // pred_region
      _
    $region9: #{tpu_custom_call.1} parent=1 // pred_fallthru
      _
    // Predicated region
    $region10: #{tpu_custom_call.1} parent=1 // pred_check
      _
    $region11: #{tpu_custom_call.1} parent=1 // pred_check_branch
      %18 = sbr.rel (0) target = $region13
    $region12: #{tpu_custom_call.1} parent=1 // pred_region
      _
    $region13: #{tpu_custom_call.1} parent=1 // pred_fallthru
      _
    // Predicated region
    $region14: #{tpu_custom_call.1} parent=1 // pred_check
      _
    $region15: #{tpu_custom_call.1} parent=1 // pred_check_branch
      %20 = sbr.rel (0) target = $region17
    $region16: #{tpu_custom_call.1} parent=1 // pred_region
      _
    $region17: #{tpu_custom_call.1} parent=1 // pred_fallthru
      _
    // Predicated region
    $region18: #{tpu_custom_call.1} parent=1 // pred_check
      _
    $region19: #{tpu_custom_call.1} parent=1 // pred_check_branch
      %22 = sbr.rel (0) target = $region21
    $region20: #{tpu_custom_call.1} parent=1 // pred_region
      _
    $region21: #{tpu_custom_call.1} parent=1 // pred_fallthru
      _
    // Predicated region
    $region22: #{tpu_custom_call.1} parent=1 // pred_check
      _
    $region23: #{tpu_custom_call.1} parent=1 // pred_check_branch
      %24 = sbr.rel (0) target = $region25
    $region24: #{tpu_custom_call.1} parent=1 // pred_region
      _
    $region25: #{tpu_custom_call.1} parent=1 // pred_fallthru
      _
    // Predicated region
    $region26: #{tpu_custom_call.1} parent=1 // pred_check
      _
    $region27: #{tpu_custom_call.1} parent=1 // pred_check_branch
      %26 = sbr.rel (0) target = $region29
    $region28: #{tpu_custom_call.1} parent=1 // pred_region
      _
    $region29: #{tpu_custom_call.1} parent=1 // pred_fallthru
      _
    %v27 = vld [vmem:[%s1] sm:$0xff]
    %v28 = vld [vmem:[%s1 + $0x8] sm:$0xff]
    %v29 = vld [vmem:[%s1 + $0x10] sm:$0xff]
    %v30 = vld [vmem:[%s1 + $0x18] sm:$0xff]
    %v31 = vld [vmem:[%s0] sm:$0xff]
    %v32 = vld [vmem:[%s0 + $0x8] sm:$0xff]
    %v33 = vld [vmem:[%s2] sm:$0xff]
    %v34 = vld [vmem:[%s2 + $0x8] sm:$0xff]
    %v35 = vld [vmem:[%s2 + $0x10] sm:$0xff]
    %v36 = vld [vmem:[%s2 + $0x18] sm:$0xff]
    %38 = vset.pattern.permute.xlu0 0
    %39 = vperm.xlu0 %38, %v33
    %v40 = vpop.permute.xlu0 %39
    %43 = vset.pattern.permute.xlu0 0
    %44 = vperm.xlu0 %43, %v34
    %v45 = vpop.permute.xlu0 %44
    %48 = vset.pattern.permute.xlu0 0
    %49 = vperm.xlu0 %48, %v35
    %v50 = vpop.permute.xlu0 %49
    %53 = vset.pattern.permute.xlu0 0
    %54 = vperm.xlu0 %53, %v36
    %v55 = vpop.permute.xlu0 %54
    %vm57 = vcmask 130048
    %v59 = vsel %vm57, %v27, 0
    %v62 = vsel %vm57, %v28, 0
    %v65 = vsel %vm57, %v29, 0
    %v68 = vsel %vm57, %v30, 0
    %70 = vmatprep.subr.mxu0 0.0
    %71 = vmatpush1.msra.mxu0 %v31
    %72 = vmatprep.subr.mxu0 0.0
    %73 = vmatpush1.msra.mxu0 %v32
    %74 = vmatprep.subr.mxu0 0.0
    %75 = vmatpush1.msra.mxu0 0.0
    %76 = vmatprep.subr.mxu0 0.0
    %77 = vmatpush1.msra.mxu0 0.0
    %78 = vmatprep.subr.mxu0 0.0
    %79 = vmatpush1.msra.mxu0 0.0
    %80 = vmatprep.subr.mxu0 0.0
    %81 = vmatpush1.msra.mxu0 0.0
    %82 = vmatprep.subr.mxu0 0.0
    %83 = vmatpush1.msra.mxu0 0.0
    %84 = vmatprep.subr.mxu0 0.0
    %85 = vmatpush1.msra.mxu0 0.0
    %86 = vmatprep.subr.mxu0 0.0
    %87 = vmatpush1.msra.mxu0 0.0
    %88 = vmatprep.subr.mxu0 0.0
    %89 = vmatpush1.msra.mxu0 0.0
    %90 = vmatprep.subr.mxu0 0.0
    %91 = vmatpush1.msra.mxu0 0.0
    %92 = vmatprep.subr.mxu0 0.0
    %93 = vmatpush1.msra.mxu0 0.0
    %94 = vmatprep.subr.mxu0 0.0
    %95 = vmatpush1.msra.mxu0 0.0
    %96 = vmatprep.subr.mxu0 0.0
    %97 = vmatpush1.msra.mxu0 0.0
    %98 = vmatprep.subr.mxu0 0.0
    %99 = vmatpush1.msra.mxu0 0.0
    %100 = vmatprep.subr.mxu0 0.0
    %101 = vmatpush1.msra.mxu0 0.0
    %102 = vmatprep.subr.mxu0 0.0
    %103 = vmatpush1.msra.mxu0 0.0
    %104 = vmatprep.subr.mxu0 0.0
    %105 = vmatpush1.msra.mxu0 0.0
    %106 = vmatprep.subr.mxu0 0.0
    %107 = vmatpush1.msra.mxu0 0.0
    %108 = vmatprep.subr.mxu0 0.0
    %109 = vmatpush1.msra.mxu0 0.0
    %110 = vmatprep.subr.mxu0 0.0
    %111 = vmatpush1.msra.mxu0 0.0
    %112 = vmatprep.subr.mxu0 0.0
    %113 = vmatpush1.msra.mxu0 0.0
    %114 = vmatprep.subr.mxu0 0.0
    %115 = vmatpush1.msra.mxu0 0.0
    %116 = vmatprep.subr.mxu0 0.0
    %117 = vmatpush1.msra.mxu0 0.0
    %118 = vmatprep.subr.mxu0 0.0
    %119 = vmatpush1.msra.mxu0 0.0
    %120 = vmatprep.subr.mxu0 0.0
    %121 = vmatpush1.msra.mxu0 0.0
    %122 = vmatprep.subr.mxu0 0.0
    %123 = vmatpush1.msra.mxu0 0.0
    %124 = vmatprep.subr.mxu0 0.0
    %125 = vmatpush1.msra.mxu0 0.0
    %126 = vmatprep.subr.mxu0 0.0
    %127 = vmatpush1.msra.mxu0 0.0
    %128 = vmatprep.subr.mxu0 0.0
    %129 = vmatpush1.msra.mxu0 0.0
    %130 = vmatprep.subr.mxu0 0.0
    %131 = vmatpush1.msra.mxu0 0.0
    %132 = vmatprep.subr.mxu0 0.0
    %133 = vmatpush1.msra.mxu0 0.0
    %134 = vmatprep.mubr.f32.mxu0 0.0
    %135 = vmatmul.mubr.f32.gmra.mrb[0].mxu0 %v59
    %v136 = vpop.f32.mrb[0].mxu0
    %v137 = vadd.f32 %v40, %v136
    %v138 = vpop.f32.mrb[0].mxu0
    %139 = vmatprep.mubr.f32.mxu0 0.0
    %140 = vmatmul.mubr.f32.gmra.mrb[0].mxu0 %v62
    %v141 = vpop.f32.mrb[0].mxu0
    %v142 = vadd.f32 %v45, %v141
    %v143 = vpop.f32.mrb[0].mxu0
    %144 = vmatprep.mubr.f32.mxu0 0.0
    %145 = vmatmul.mubr.f32.gmra.mrb[0].mxu0 %v65
    %v146 = vpop.f32.mrb[0].mxu0
    %v147 = vadd.f32 %v50, %v146
    %v148 = vpop.f32.mrb[0].mxu0
    %149 = vmatprep.mubr.f32.mxu0 0.0
    %150 = vmatmul.mubr.f32.gmra.mrb[0].mxu0 %v68
    %v151 = vpop.f32.mrb[0].mxu0
    %v152 = vadd.f32 %v55, %v151
    %v153 = vpop.f32.mrb[0].mxu0
    %154 = vdwg.mxu0
    %v155 = vtanh.pop %v137
    %v156 = vtanh.pop %v142
    %v157 = vtanh.pop %v147
    %v158 = vtanh.pop %v152
    %v159 = vld [vmem:[%s3] sm:$0xff]
    %v160 = vld [vmem:[%s3 + $0x8] sm:$0xff]
    %v161 = vld [vmem:[%s3 + $0x10] sm:$0xff]
    %v162 = vld [vmem:[%s3 + $0x18] sm:$0xff]
    %v163 = vld [vmem:[%s4] sm:$0xff]
    %v164 = vld [vmem:[%s4 + $0x8] sm:$0xff]
    %v165 = vld [vmem:[%s4 + $0x10] sm:$0xff]
    %v166 = vld [vmem:[%s4 + $0x18] sm:$0xff]
    %168 = vset.pattern.permute.xlu0 0
    %169 = vperm.xlu0 %168, %v163
    %v170 = vpop.permute.xlu0 %169
    %173 = vset.pattern.permute.xlu0 0
    %174 = vperm.xlu0 %173, %v164
    %v175 = vpop.permute.xlu0 %174
    %178 = vset.pattern.permute.xlu0 0
    %179 = vperm.xlu0 %178, %v165
    %v180 = vpop.permute.xlu0 %179
    %183 = vset.pattern.permute.xlu0 0
    %184 = vperm.xlu0 %183, %v166
    %v185 = vpop.permute.xlu0 %184
    %vm187 = vcmask 261120
    %v189 = vsel %vm187, %v159, 0
    %v192 = vsel %vm187, %v160, 0
    %v195 = vsel %vm187, %v161, 0
    %v198 = vsel %vm187, %v162, 0
    %200 = vmatprep.subr.mxu0 0.0
    %201 = vmatpush1.msra.mxu0 %v155
    %202 = vmatprep.subr.mxu0 0.0
    %203 = vmatpush1.msra.mxu0 %v156
    %204 = vmatprep.subr.mxu0 0.0
    %205 = vmatpush1.msra.mxu0 %v157
    %206 = vmatprep.subr.mxu0 0.0
    %207 = vmatpush1.msra.mxu0 %v158
    %208 = vmatprep.subr.mxu0 0.0
    %209 = vmatpush1.msra.mxu0 0.0
    %210 = vmatprep.subr.mxu0 0.0
    %211 = vmatpush1.msra.mxu0 0.0
    %212 = vmatprep.subr.mxu0 0.0
    %213 = vmatpush1.msra.mxu0 0.0
    %214 = vmatprep.subr.mxu0 0.0
    %215 = vmatpush1.msra.mxu0 0.0
    %216 = vmatprep.subr.mxu0 0.0
    %217 = vmatpush1.msra.mxu0 0.0
    %218 = vmatprep.subr.mxu0 0.0
    %219 = vmatpush1.msra.mxu0 0.0
    %220 = vmatprep.subr.mxu0 0.0
    %221 = vmatpush1.msra.mxu0 0.0
    %222 = vmatprep.subr.mxu0 0.0
    %223 = vmatpush1.msra.mxu0 0.0
    %224 = vmatprep.subr.mxu0 0.0
    %225 = vmatpush1.msra.mxu0 0.0
    %226 = vmatprep.subr.mxu0 0.0
    %227 = vmatpush1.msra.mxu0 0.0
    %228 = vmatprep.subr.mxu0 0.0
    %229 = vmatpush1.msra.mxu0 0.0
    %230 = vmatprep.subr.mxu0 0.0
    %231 = vmatpush1.msra.mxu0 0.0
    %232 = vmatprep.subr.mxu0 0.0
    %233 = vmatpush1.msra.mxu0 0.0
    %234 = vmatprep.subr.mxu0 0.0
    %235 = vmatpush1.msra.mxu0 0.0
    %236 = vmatprep.subr.mxu0 0.0
    %237 = vmatpush1.msra.mxu0 0.0
    %238 = vmatprep.subr.mxu0 0.0
    %239 = vmatpush1.msra.mxu0 0.0
    %240 = vmatprep.subr.mxu0 0.0
    %241 = vmatpush1.msra.mxu0 0.0
    %242 = vmatprep.subr.mxu0 0.0
    %243 = vmatpush1.msra.mxu0 0.0
    %244 = vmatprep.subr.mxu0 0.0
    %245 = vmatpush1.msra.mxu0 0.0
    %246 = vmatprep.subr.mxu0 0.0
    %247 = vmatpush1.msra.mxu0 0.0
    %248 = vmatprep.subr.mxu0 0.0
    %249 = vmatpush1.msra.mxu0 0.0
    %250 = vmatprep.subr.mxu0 0.0
    %251 = vmatpush1.msra.mxu0 0.0
    %252 = vmatprep.subr.mxu0 0.0
    %253 = vmatpush1.msra.mxu0 0.0
    %254 = vmatprep.subr.mxu0 0.0
    %255 = vmatpush1.msra.mxu0 0.0
    %256 = vmatprep.subr.mxu0 0.0
    %257 = vmatpush1.msra.mxu0 0.0
    %258 = vmatprep.subr.mxu0 0.0
    %259 = vmatpush1.msra.mxu0 0.0
    %260 = vmatprep.subr.mxu0 0.0
    %261 = vmatpush1.msra.mxu0 0.0
    %262 = vmatprep.subr.mxu0 0.0
    %263 = vmatpush1.msra.mxu0 0.0
    %264 = vmatprep.mubr.f32.mxu0 0.0
    %265 = vmatmul.mubr.f32.gmra.mrb[0].mxu0 %v189
    %v266 = vpop.f32.mrb[0].mxu0
    %v267 = vadd.f32 %v170, %v266
    %v268 = vpop.f32.mrb[0].mxu0
    %269 = vmatprep.mubr.f32.mxu0 0.0
    %270 = vmatmul.mubr.f32.gmra.mrb[0].mxu0 %v192
    %v271 = vpop.f32.mrb[0].mxu0
    %v272 = vadd.f32 %v175, %v271
    %v273 = vpop.f32.mrb[0].mxu0
    %274 = vmatprep.mubr.f32.mxu0 0.0
    %275 = vmatmul.mubr.f32.gmra.mrb[0].mxu0 %v195
    %v276 = vpop.f32.mrb[0].mxu0
    %v277 = vadd.f32 %v180, %v276
    %v278 = vpop.f32.mrb[0].mxu0
    %279 = vmatprep.mubr.f32.mxu0 0.0
    %280 = vmatmul.mubr.f32.gmra.mrb[0].mxu0 %v198
    %v281 = vpop.f32.mrb[0].mxu0
    %v282 = vadd.f32 %v185, %v281
    %v283 = vpop.f32.mrb[0].mxu0
    %284 = vdwg.mxu0
    %v285 = vtanh.pop %v267
    %v286 = vtanh.pop %v272
    %v287 = vtanh.pop %v277
    %v288 = vtanh.pop %v282
    %v289 = vld [vmem:[%s5] sm:$0xff]
    %v290 = vld [vmem:[%s6] sm:$0xff]
    %292 = vset.pattern.permute.xlu0 0
    %293 = vperm.xlu0 %292, %v290
    %v294 = vpop.permute.xlu0 %293
    %v297 = vsel %vm187, %v289, 0
    %299 = vmatprep.subr.mxu0 0.0
    %300 = vmatpush1.msra.mxu0 %v285
    %301 = vmatprep.subr.mxu0 0.0
    %302 = vmatpush1.msra.mxu0 %v286
    %303 = vmatprep.subr.mxu0 0.0
    %304 = vmatpush1.msra.mxu0 %v287
    %305 = vmatprep.subr.mxu0 0.0
    %306 = vmatpush1.msra.mxu0 %v288
    %307 = vmatprep.subr.mxu0 0.0
    %308 = vmatpush1.msra.mxu0 0.0
    %309 = vmatprep.subr.mxu0 0.0
    %310 = vmatpush1.msra.mxu0 0.0
    %311 = vmatprep.subr.mxu0 0.0
    %312 = vmatpush1.msra.mxu0 0.0
    %313 = vmatprep.subr.mxu0 0.0
    %314 = vmatpush1.msra.mxu0 0.0
    %315 = vmatprep.subr.mxu0 0.0
    %316 = vmatpush1.msra.mxu0 0.0
    %317 = vmatprep.subr.mxu0 0.0
    %318 = vmatpush1.msra.mxu0 0.0
    %319 = vmatprep.subr.mxu0 0.0
    %320 = vmatpush1.msra.mxu0 0.0
    %321 = vmatprep.subr.mxu0 0.0
    %322 = vmatpush1.msra.mxu0 0.0
    %323 = vmatprep.subr.mxu0 0.0
    %324 = vmatpush1.msra.mxu0 0.0
    %325 = vmatprep.subr.mxu0 0.0
    %326 = vmatpush1.msra.mxu0 0.0
    %327 = vmatprep.subr.mxu0 0.0
    %328 = vmatpush1.msra.mxu0 0.0
    %329 = vmatprep.subr.mxu0 0.0
    %330 = vmatpush1.msra.mxu0 0.0
    %331 = vmatprep.subr.mxu0 0.0
    %332 = vmatpush1.msra.mxu0 0.0
    %333 = vmatprep.subr.mxu0 0.0
    %334 = vmatpush1.msra.mxu0 0.0
    %335 = vmatprep.subr.mxu0 0.0
    %336 = vmatpush1.msra.mxu0 0.0
    %337 = vmatprep.subr.mxu0 0.0
    %338 = vmatpush1.msra.mxu0 0.0
    %339 = vmatprep.subr.mxu0 0.0
    %340 = vmatpush1.msra.mxu0 0.0
    %341 = vmatprep.subr.mxu0 0.0
    %342 = vmatpush1.msra.mxu0 0.0
    %343 = vmatprep.subr.mxu0 0.0
    %344 = vmatpush1.msra.mxu0 0.0
    %345 = vmatprep.subr.mxu0 0.0
    %346 = vmatpush1.msra.mxu0 0.0
    %347 = vmatprep.subr.mxu0 0.0
    %348 = vmatpush1.msra.mxu0 0.0
    %349 = vmatprep.subr.mxu0 0.0
    %350 = vmatpush1.msra.mxu0 0.0
    %351 = vmatprep.subr.mxu0 0.0
    %352 = vmatpush1.msra.mxu0 0.0
    %353 = vmatprep.subr.mxu0 0.0
    %354 = vmatpush1.msra.mxu0 0.0
    %355 = vmatprep.subr.mxu0 0.0
    %356 = vmatpush1.msra.mxu0 0.0
    %357 = vmatprep.subr.mxu0 0.0
    %358 = vmatpush1.msra.mxu0 0.0
    %359 = vmatprep.subr.mxu0 0.0
    %360 = vmatpush1.msra.mxu0 0.0
    %361 = vmatprep.subr.mxu0 0.0
    %362 = vmatpush1.msra.mxu0 0.0
    %363 = vmatprep.mubr.f32.mxu0 0.0
    %364 = vmatmul.mubr.f32.gmra.mrb[0].mxu0 %v297
    %v365 = vpop.f32.mrb[0].mxu0
    %v366 = vadd.f32 %v294, %v365
    %v367 = vpop.f32.mrb[0].mxu0
    %368 = vdwg.mxu0
    %369 = vst [vmem:[#allocation2] sm:$0xff] %v366
    // Predicated region
    $region30: #{tpu_custom_call.1} parent=1 // pred_check
      _
    $region31: #{tpu_custom_call.1} parent=1 // pred_check_branch
      %371 = sbr.rel (0) target = $region33
    $region32: #{tpu_custom_call.1} parent=1 // pred_region
      %s373 = ssub.s32 128, 128
      %374 = vsyncadd [#allocation3], %s373
      %s376 = sshll.u32 [#allocation2], 4
      %s377 = int_to_ptr.vmem [resolvable:$true] %s376
      %379 = dma.vmem_to_hbm [thread:$0]  %s377, 128, %s7, [#allocation3]
    $region33: #{tpu_custom_call.1} parent=1 // pred_fallthru
      _
    // Predicated region
    $region34: #{tpu_custom_call.1} parent=1 // pred_check
      _
    $region35: #{tpu_custom_call.1} parent=1 // pred_check_branch
      %381 = sbr.rel (0) target = $region37
    $region36: #{tpu_custom_call.1} parent=1 // pred_region
      %382 = dma.done [#allocation3], 128
    $region37: #{tpu_custom_call.1} parent=1 // pred_fallthru
      _
    %383 = vsyncpa [#allocation3], 1

</llo_original>
